<compile_context>
chip_gen: v7x
topology: tpu7x:2x2x1
jax: 0.10.0
libtpu: 0.0.40
codegen_flags: <defaults>
</compile_context>

<pallas_src>
import math

import jax
import jax.numpy as jnp
from jax import lax
from jax.experimental import pallas as pl
from jax.experimental.pallas import tpu as pltpu

_MiB = 1024 * 1024


def _vmem_capacity_bytes():
    """Per-core VMEM capacity; falls back to 128 MiB (v5e/v6e) if unknown."""
    try:
        cap = int(pltpu.get_tpu_info().vmem_capacity_bytes)
        if cap > 0:
            return cap
    except Exception:
        pass
    return 128 * _MiB


def _round_up(v, m):
    return ((v + m - 1) // m) * m


def _make_kernel(tk_e, in_dim, has_bias, direct_out):
    """Build the (M, N, K)-tiled matmul body.

    direct_out=True  -> accumulate straight into the f32 output block (it is
                        resident across the K axis since its index_map ignores
                        k), no scratch accumulator.
    direct_out=False -> accumulate into an f32 VMEM scratch, downcast on the
                        final K step.
    A K-tail mask (iota compare on *both* operands, so stale-VMEM NaNs cannot
    leak through 0*NaN) handles in_dim % tk_e != 0.
    """
    k_rem = in_dim % tk_e

    def body(x_ref, w_ref, b_ref, o_ref, acc_ref):
        k = pl.program_id(2)
        nk = pl.num_programs(2)

        @pl.when(k == 0)
        def _init():
            acc_ref[...] = jnp.zeros_like(acc_ref)

        xv = x_ref[...]
        wv = w_ref[...]
        if k_rem:  # static: only emitted when K has a ragged tail
            limit = jnp.where(k == nk - 1, k_rem, tk_e)
            kx = lax.broadcasted_iota(jnp.int32, xv.shape, 1)
            xv = jnp.where(kx < limit, xv, jnp.zeros_like(xv))
            kw = lax.broadcasted_iota(jnp.int32, wv.shape, 0)
            wv = jnp.where(kw < limit, wv, jnp.zeros_like(wv))

        acc_ref[...] += jnp.dot(xv, wv, preferred_element_type=jnp.float32)

        if has_bias or not direct_out:
            @pl.when(k == nk - 1)
            def _finalize():
                out = acc_ref[...]
                if has_bias:
                    out = out + b_ref[...].astype(jnp.float32)
                o_ref[...] = out.astype(o_ref.dtype)

    if direct_out:
        if has_bias:
            def kernel(x_ref, w_ref, b_ref, o_ref):
                body(x_ref, w_ref, b_ref, o_ref, o_ref)
        else:
            def kernel(x_ref, w_ref, o_ref):
                body(x_ref, w_ref, None, o_ref, o_ref)
    else:
        if has_bias:
            def kernel(x_ref, w_ref, b_ref, o_ref, acc_ref):
                body(x_ref, w_ref, b_ref, o_ref, acc_ref)
        else:
            def kernel(x_ref, w_ref, o_ref, acc_ref):
                body(x_ref, w_ref, None, o_ref, acc_ref)
    return kernel


def linear_norm(x, weight_t, bias=None, *, tm=None, tn=None, tk=None,
                compute_dtype=None):
    """y = x @ weight_t + bias, matching torch.nn.Linear.forward.

    x:        (..., in_dim)
    weight_t: (in_dim, out_dim)   (transpose of PyTorch's (out_dim, in_dim))
    bias:     (out_dim,) or None
    compute_dtype: optionally cast operands (e.g. jnp.bfloat16) before the
        matmul to halve HBM bytes; the accumulation stays f32.
    """
    in_dim, out_dim = weight_t.shape
    lead_shape = x.shape[:-1]
    M = int(math.prod(lead_shape)) if lead_shape else 1

    out_dtype = x.dtype
    x2 = x.reshape(M, in_dim)
    w2 = weight_t
    if compute_dtype is not None:
        x2 = x2.astype(compute_dtype)
        w2 = w2.astype(compute_dtype)

    has_bias = bias is not None
    direct_out = jnp.dtype(out_dtype) == jnp.dtype(jnp.float32)

    x_b = jnp.dtype(x2.dtype).itemsize
    w_b = jnp.dtype(w2.dtype).itemsize
    o_b = jnp.dtype(out_dtype).itemsize
    b_b = jnp.dtype(bias.dtype).itemsize if has_bias else 0

    # --- generation-aware VMEM budget ---------------------------------------
    cap = _vmem_capacity_bytes()
    budget = min((cap * 3) // 4, 100 * _MiB)  # ~48 MiB on v7x, ~96 on v5e/v6e
    two_cores = cap <= 96 * _MiB              # heuristic: v7x (64 MiB VMEM, 2 TC)
    big_vmem = cap >= 100 * _MiB

    sub = max(8, 32 // x_b)                   # sublane pack of the x dtype

    tm_pref = tm if tm is not None else 512
    tn_pref = tn if tn is not None else (2048 if big_vmem else 1024)
    tk_pref = tk if tk is not None else 1024

    # M / N are parallel axes: full dim when small (always legal), otherwise a
    # large 256-aligned tile (v6e/v7x MXUs are 2x256x256); partial edge blocks
    # are handled by Pallas (discarded OOB writes), so no padded copies of x.
    tm_e = M if M <= tm_pref else max(sub, (tm_pref // sub) * sub)
    tn_e = out_dim if out_dim <= tn_pref else max(256, (tn_pref // 256) * 256)
    tk_e = in_dim if in_dim <= tk_pref else max(256, (tk_pref // 256) * 256)

    # v7x: ensure >= 2 parallel output blocks so both TensorCores get work.
    if two_cores and pl.cdiv(M, tm_e) * pl.cdiv(out_dim, tn_e) < 2:
        if out_dim >= 256:
            tn_e = _round_up((out_dim + 1) // 2, 128)
        elif M >= 2 * sub:
            tm_e = _round_up((M + 1) // 2, sub)

    def footprint(tm_, tn_, tk_, wbuf=2):
        f = 2 * tm_ * tk_ * x_b + wbuf * tk_ * tn_ * w_b + 2 * tm_ * tn_ * o_b
        if has_bias:
            f += 2 * tn_ * b_b
        if not direct_out:
            f += tm_ * tn_ * 4
        return f

    # Shrink (rarely triggered with the defaults) until the double-buffered
    # working set fits the per-generation budget.
    while footprint(tm_e, tn_e, tk_e) > budget:
        if tk_e > 256 and tk_e % 256 == 0:
            tk_e //= 2
        elif tn_e > 256 and tn_e % 256 == 0:
            tn_e //= 2
        elif tm_e > sub and tm_e % (2 * sub) == 0:
            tm_e //= 2
        else:
            break

    grid_m = pl.cdiv(M, tm_e)
    grid_n = pl.cdiv(out_dim, tn_e)
    grid_k = pl.cdiv(in_dim, tk_e)
    grid = (grid_m, grid_n, grid_k)

    # Small-M (weight-streaming, HBM-bound) regime: deepen the weight pipeline.
    w_index_map = lambda i, j, k: (k, j)
    w_spec = pl.BlockSpec((tk_e, tn_e), w_index_map)
    if (M <= 256 and grid_k >= 4
            and footprint(tm_e, tn_e, tk_e, wbuf=3) <= budget):
        try:
            w_spec = pl.BlockSpec((tk_e, tn_e), w_index_map,
                                  pipeline_mode=pl.Buffered(3))
        except TypeError:
            pass  # BlockSpec without pipeline_mode: keep default double-buffer

    in_specs = [pl.BlockSpec((tm_e, tk_e), lambda i, j, k: (i, k)), w_spec]
    args = [x2, w2]
    if has_bias:
        in_specs.append(pl.BlockSpec((1, tn_e), lambda i, j, k: (0, j)))
        args.append(bias.reshape(1, out_dim))

    scratch_shapes = [] if direct_out else [pltpu.VMEM((tm_e, tn_e), jnp.float32)]

    cost = pl.CostEstimate(
        flops=2 * M * in_dim * out_dim,
        transcendentals=0,
        bytes_accessed=int(M * in_dim * x_b * grid_n          # x re-read per N block
                           + in_dim * out_dim * w_b * grid_m  # W re-read per M block
                           + (out_dim * b_b if has_bias else 0)
                           + M * out_dim * o_b),
    )

    out = pl.pallas_call(
        _make_kernel(tk_e, in_dim, has_bias, direct_out),
        out_shape=jax.ShapeDtypeStruct((M, out_dim), out_dtype),
        grid_spec=pltpu.PrefetchScalarGridSpec(
            num_scalar_prefetch=0,
            grid=grid,
            in_specs=in_specs,
            out_specs=pl.BlockSpec((tm_e, tn_e), lambda i, j, k: (i, j)),
            scratch_shapes=scratch_shapes,
        ),
        compiler_params=pltpu.CompilerParams(
            dimension_semantics=("parallel", "parallel", "arbitrary"),
            vmem_limit_bytes=int(budget),
        ),
        cost_estimate=cost,
    )(*args)

    return out.reshape(*lead_shape, out_dim)


def init_linear_norm_params(key, in_dim, out_dim, w_init_gain="linear"):
    """Xavier-uniform weight (gain from calculate_gain), PyTorch-default bias
    init (uniform(-1/sqrt(in_dim), 1/sqrt(in_dim)))."""
    gain = 1.0  # torch.nn.init.calculate_gain('linear') == 1.0
    kw, kb = jax.random.split(key)
    limit = gain * math.sqrt(6.0 / (in_dim + out_dim))
    # PyTorch weight is (out_dim, in_dim); we store its transpose.
    weight = jax.random.uniform(kw, (out_dim, in_dim), jnp.float32, -limit, limit)
    bound = 1.0 / math.sqrt(in_dim)
    bias = jax.random.uniform(kb, (out_dim,), jnp.float32, -bound, bound)
    return weight.T, bias


if __name__ == "__main__":
    key = jax.random.PRNGKey(0)
    k1, k2, k3, k4, k5, k6 = jax.random.split(key, 6)

    # 1) Small shape matching the module's typical (batch, seq, in_dim) input.
    batch, seq, in_dim, out_dim = 2, 8, 32, 48
    x = jax.random.normal(k1, (batch, seq, in_dim), jnp.float32)
    w_t, b = init_linear_norm_params(k2, in_dim, out_dim)
    y = jax.block_until_ready(linear_norm(x, w_t, b))
    y_ref = x @ w_t + b
    assert y.shape == (batch, seq, out_dim)
    assert jnp.allclose(y, y_ref, atol=1e-5, rtol=1e-5)

    # 2) bias=False path: bias-free kernel variant, no zero-bias materialized.
    y_nb = jax.block_until_ready(linear_norm(x, w_t, None))
    assert jnp.allclose(y_nb, x @ w_t, atol=1e-5, rtol=1e-5)

    # 3) Larger case: partial M edge handling, f32 accumulate-in-output path
    #    (and the v7x two-core N split when running on v7x).
    b2, s2, din2, dout2 = 3, 100, 768, 640
    xb = jax.random.normal(k3, (b2, s2, din2), jnp.float32)
    wb, biasb = init_linear_norm_params(k4, din2, dout2)
    yb = jax.block_until_ready(linear_norm(xb, wb, biasb))
    yb_ref = xb @ wb + biasb
    assert yb.shape == (b2, s2, dout2)
    # Loose tolerance to cover MXU f32 (bf16-pass) precision on the long K sum.
    assert jnp.allclose(yb, yb_ref, atol=2e-3, rtol=2e-3)

    # 4) in_dim > tile_k with a non-divisible tail (1100 = 1024 + 76):
    #    exercises the masked final K step instead of a whole-K fallback.
    b3, s3, din3, dout3 = 4, 16, 1100, 256
    xc = jax.random.normal(k5, (b3, s3, din3), jnp.float32)
    wc, biasc = init_linear_norm_params(k6, din3, dout3)
    yc = jax.block_until_ready(linear_norm(xc, wc, biasc, tk=1024))
    yc_ref = xc @ wc + biasc
    assert yc.shape == (b3, s3, dout3)
    assert jnp.allclose(yc, yc_ref, atol=2e-2, rtol=2e-2)

    print("KERNEL_OK")
</pallas_src>

<mosaic_0001>
module attributes {stable_mosaic.version = 11 : i64} {
  func.func @kernel(%arg0: i32, %arg1: i32, %arg2: i32, %arg3: memref<16x32xf32, #tpu.memory_space<vmem>>, %arg4: memref<32x48xf32, #tpu.memory_space<vmem>>, %arg5: memref<1x48xf32, #tpu.memory_space<vmem>>, %arg6: memref<16x48xf32, #tpu.memory_space<vmem>>) attributes {dimension_semantics = [#tpu.dimension_semantics<parallel>, #tpu.dimension_semantics<parallel>, #tpu.dimension_semantics<arbitrary>], iteration_bounds = array<i64: 1, 1, 1>, scalar_prefetch = 0 : i64, scratch_operands = 0 : i64, tpu.core_type = #tpu.core_type<tc>, window_params = [{transform_indices = @transform_0, window_bounds = array<i64: 16, 32>}, {transform_indices = @transform_1, window_bounds = array<i64: 32, 48>}, {transform_indices = @transform_2, window_bounds = array<i64: 1, 48>}, {transform_indices = @transform_3, window_bounds = array<i64: 16, 48>}]} {
    %c0_i32 = arith.constant 0 : i32
    %0 = arith.cmpi eq, %arg2, %c0_i32 : i32
    %1 = arith.extui %0 : i1 to i32
    %c0_i32_0 = arith.constant 0 : i32
    %2 = arith.cmpi ne, %1, %c0_i32_0 : i32
    scf.if %2 {
      %cst_10 = arith.constant 0.000000e+00 : f32
      %12 = vector.broadcast %cst_10 : f32 to vector<16x48xf32>
      %c0_11 = arith.constant 0 : index
      %c0_12 = arith.constant 0 : index
      %13 = vector.load %arg6[%c0_11, %c0_12] : memref<16x48xf32, #tpu.memory_space<vmem>>, vector<16x48xf32>
      tpu.vector_store %arg6[%c0_11, %c0_12], %12 {strides = array<i32>} : memref<16x48xf32, #tpu.memory_space<vmem>>, vector<16x48xf32>,
    } else {
    }
    %c0 = arith.constant 0 : index
    %c0_1 = arith.constant 0 : index
    %3 = vector.load %arg3[%c0, %c0_1] : memref<16x32xf32, #tpu.memory_space<vmem>>, vector<16x32xf32>
    %c0_2 = arith.constant 0 : index
    %c0_3 = arith.constant 0 : index
    %4 = vector.load %arg4[%c0_2, %c0_3] : memref<32x48xf32, #tpu.memory_space<vmem>>, vector<32x48xf32>
    %c0_4 = arith.constant 0 : index
    %c0_5 = arith.constant 0 : index
    %5 = vector.load %arg6[%c0_4, %c0_5] : memref<16x48xf32, #tpu.memory_space<vmem>>, vector<16x48xf32>
    %cst = arith.constant dense<0.000000e+00> : vector<16x48xf32>
    %6 = tpu.matmul %3, %4, %cst {dimension_numbers = #tpu.dot_dimension_numbers<[1], [0], [0], [1], [0, 0, 1, 1], [], []>} : vector<16x32xf32>, vector<32x48xf32>, vector<16x48xf32> -> vector<16x48xf32>
    %7 = arith.addf %5, %6 : vector<16x48xf32>
    %c0_6 = arith.constant 0 : index
    %c0_7 = arith.constant 0 : index
    %8 = vector.load %arg6[%c0_6, %c0_7] : memref<16x48xf32, #tpu.memory_space<vmem>>, vector<16x48xf32>
    tpu.vector_store %arg6[%c0_6, %c0_7], %7 {strides = array<i32>} : memref<16x48xf32, #tpu.memory_space<vmem>>, vector<16x48xf32>,
    %c0_i32_8 = arith.constant 0 : i32
    %9 = arith.cmpi eq, %arg2, %c0_i32_8 : i32
    %10 = arith.extui %9 : i1 to i32
    %c0_i32_9 = arith.constant 0 : i32
    %11 = arith.cmpi ne, %10, %c0_i32_9 : i32
    scf.if %11 {
      %c0_10 = arith.constant 0 : index
      %c0_11 = arith.constant 0 : index
      %12 = vector.load %arg6[%c0_10, %c0_11] : memref<16x48xf32, #tpu.memory_space<vmem>>, vector<16x48xf32>
      %c0_12 = arith.constant 0 : index
      %c0_13 = arith.constant 0 : index
      %13 = vector.load %arg5[%c0_12, %c0_13] : memref<1x48xf32, #tpu.memory_space<vmem>>, vector<1x48xf32>
      %14 = vector.broadcast %13 : vector<1x48xf32> to vector<16x48xf32>
      %15 = arith.addf %12, %14 : vector<16x48xf32>
      %c0_14 = arith.constant 0 : index
      %c0_15 = arith.constant 0 : index
      %16 = vector.load %arg6[%c0_14, %c0_15] : memref<16x48xf32, #tpu.memory_space<vmem>>, vector<16x48xf32>
      tpu.vector_store %arg6[%c0_14, %c0_15], %15 {strides = array<i32>} : memref<16x48xf32, #tpu.memory_space<vmem>>, vector<16x48xf32>,
    } else {
    }
    return
  }
  func.func @transform_0(%arg0: i32, %arg1: i32, %arg2: i32) -> (i32, i32) {
    %c0_i32 = arith.constant 0 : i32
    return %arg0, %arg2 : i32, i32
  }
  func.func @transform_1(%arg0: i32, %arg1: i32, %arg2: i32) -> (i32, i32) {
    %c0_i32 = arith.constant 0 : i32
    return %arg2, %arg1 : i32, i32
  }
  func.func @transform_2(%arg0: i32, %arg1: i32, %arg2: i32) -> (i32, i32) {
    %c0_i32 = arith.constant 0 : i32
    %c0_i32_0 = arith.constant 0 : i32
    return %c0_i32, %arg1 : i32, i32
  }
  func.func @transform_3(%arg0: i32, %arg1: i32, %arg2: i32) -> (i32, i32) {
    %c0_i32 = arith.constant 0 : i32
    return %arg0, %arg1 : i32, i32
  }
}

</mosaic_0001>

<llo_original>
// kernel: tpu_custom_call.1
$region0: #{tpu_custom_call.1}
  #allocation0 [shape = 'u32[]', space=smem, size = 0x4, offset = 0x4, fixed_abs, tag = 'smem constant byte address 0x4 - core index']
  #allocation1 [shape = 'u32[144,128]{1,0:T(1,128)}', space=vmem, size = 0x12000, scoped, tag = 'internal scratch']
  %s0 = inlined_call_operand.hbm [shape: f32[16,32], index: 0, kind: input, shape index: {}]
  %s1 = inlined_call_operand.hbm [shape: f32[32,48], index: 1, kind: input, shape index: {}]
  %s2 = inlined_call_operand.hbm [shape: f32[1,48], index: 2, kind: input, shape index: {}]
  %s3 = inlined_call_operand.hbm [shape: f32[16,48], index: 3, kind: output, shape index: {}]
  %s4 = sld [smem:[#allocation0]]
  $region42: #{tpu_custom_call.1} parent=0
    _
  %s6 = ssub.s32 1, %s4
  %s7 = scalar_select 0, %s6, %s4
  $region1: #{tpu_custom_call.1} parent=0
    #allocation2 [shape = 'u8[8192]{0}', space=vmem, size = 0x2000, scoped, tag = 'input window, operand 0, single buffered']
    #allocation3 [shape = 's32[1]{0}', space=sflag, size = 0x4, scoped, tag = 'scoped memory for tpu_custom_call.1']
    #allocation4 [shape = 's32[1]{0}', space=sflag, size = 0x4, scoped, tag = 'scoped memory for tpu_custom_call.1']
    #allocation5 [shape = 'u8[16384]{0}', space=vmem, size = 0x4000, scoped, tag = 'input window, operand 1, single buffered']
    #allocation6 [shape = 's32[1]{0}', space=sflag, size = 0x4, scoped, tag = 'scoped memory for tpu_custom_call.1']
    #allocation7 [shape = 'u8[512]{0}', space=vmem, size = 0x400, scoped, tag = 'input window, operand 2, single buffered']
    #allocation8 [shape = 'u8[8192]{0}', space=vmem, size = 0x2000, scoped, tag = 'output window, operand 0, single buffered']
    %8 = vsyncpa [#allocation3], 0
    %9 = vsyncpa [#allocation6], 0
    %10 = vsyncpa [#allocation4], 0
    // Predicated region
    $region2: #{tpu_custom_call.1} parent=1 // pred_check
      _
    $region3: #{tpu_custom_call.1} parent=1 // pred_check_branch
      %12 = sbr.rel (0) target = $region5
    $region4: #{tpu_custom_call.1} parent=1 // pred_region
      %s14 = ssub.s32 256, 256
      %15 = vsyncadd [#allocation3], %s14
      %s16 = sshll.u32 [#allocation2], 4
      %s17 = int_to_ptr.vmem [resolvable:$true] %s16
      %22 = dma.hbm_to_vmem [thread:$0]  %s0, 256, %s17, [#allocation3], 128, 128, 8
    $region5: #{tpu_custom_call.1} parent=1 // pred_fallthru
      _
    // Predicated region
    $region6: #{tpu_custom_call.1} parent=1 // pred_check
      _
    $region7: #{tpu_custom_call.1} parent=1 // pred_check_branch
      %24 = sbr.rel (0) target = $region9
    $region8: #{tpu_custom_call.1} parent=1 // pred_region
      %s26 = ssub.s32 512, 512
      %27 = vsyncadd [#allocation6], %s26
      %s28 = sshll.u32 [#allocation5], 4
      %s29 = int_to_ptr.vmem [resolvable:$true] %s28
      %34 = dma.hbm_to_vmem [thread:$0]  %s1, 512, %s29, [#allocation6], 128, 128, 8
    $region9: #{tpu_custom_call.1} parent=1 // pred_fallthru
      _
    // Predicated region
    $region10: #{tpu_custom_call.1} parent=1 // pred_check
      _
    $region11: #{tpu_custom_call.1} parent=1 // pred_check_branch
      %36 = sbr.rel (0) target = $region13
    $region12: #{tpu_custom_call.1} parent=1 // pred_region
      %s38 = ssub.s32 16, 16
      %39 = vsyncadd [#allocation6], %s38
      %s41 = sshll.u32 [#allocation7], 4
      %s42 = int_to_ptr.vmem [resolvable:$true] %s41
      %44 = dma.hbm_to_vmem [thread:$0]  %s2, 16, %s42, [#allocation6]
    $region13: #{tpu_custom_call.1} parent=1 // pred_fallthru
      _
    // Predicated region
    $region14: #{tpu_custom_call.1} parent=1 // pred_check
      _
    $region15: #{tpu_custom_call.1} parent=1 // pred_check_branch
      %46 = sbr.rel (0) target = $region17
    $region16: #{tpu_custom_call.1} parent=1 // pred_region
      %47 = dma.done [#allocation3], 256
    $region17: #{tpu_custom_call.1} parent=1 // pred_fallthru
      _
    // Predicated region
    $region18: #{tpu_custom_call.1} parent=1 // pred_check
      _
    $region19: #{tpu_custom_call.1} parent=1 // pred_check_branch
      %49 = sbr.rel (0) target = $region21
    $region20: #{tpu_custom_call.1} parent=1 // pred_region
      %50 = dma.done [#allocation6], 512
    $region21: #{tpu_custom_call.1} parent=1 // pred_fallthru
      _
    // Predicated region
    $region22: #{tpu_custom_call.1} parent=1 // pred_check
      _
    $region23: #{tpu_custom_call.1} parent=1 // pred_check_branch
      %52 = sbr.rel (0) target = $region25
    $region24: #{tpu_custom_call.1} parent=1 // pred_region
      %53 = dma.done [#allocation6], 16
    $region25: #{tpu_custom_call.1} parent=1 // pred_fallthru
      _
    %p54 = scmp.eq.s32.totalorder 0, 0
    // Predicated region
    $region26: #{tpu_custom_call.1} parent=1 // pred_check
      %p55 = pneg %p54
    $region27: #{tpu_custom_call.1} parent=1 // pred_check_branch
      %57 = sbr.rel (%p55) target = $region29
    $region28: #{tpu_custom_call.1} parent=1 // pred_region
      %vm58 = vcmask 392192
      %59 = vst.msk [vmem:[#allocation8] sm:$0xff] %vm58, 0.0
      %60 = vst.msk [vmem:[#allocation8 + $0x8] sm:$0xff] %vm58, 0.0
    $region29: #{tpu_custom_call.1} parent=1 // pred_fallthru
      _
    %v61 = vld [vmem:[#allocation2] sm:$0xff]
    %v62 = vld [vmem:[#allocation2 + $0x8] sm:$0xff]
    %v63 = vld [vmem:[#allocation5] sm:$0xff]
    %v64 = vld [vmem:[#allocation5 + $0x8] sm:$0xff]
    %v65 = vld [vmem:[#allocation5 + $0x10] sm:$0xff]
    %v66 = vld [vmem:[#allocation5 + $0x18] sm:$0xff]
    %v67 = vld [vmem:[#allocation8] sm:$0xff]
    %v68 = vld [vmem:[#allocation8 + $0x8] sm:$0xff]
    %vm69 = vcmask 261120
    %v71 = vsel %vm69, %v61, 0
    %v74 = vsel %vm69, %v62, 0
    %76 = vmatprep.subr.mxu0 0.0
    %77 = vmatpush1.msra.mxu0 %v63
    %78 = vmatprep.subr.mxu0 0.0
    %79 = vmatpush1.msra.mxu0 %v64
    %80 = vmatprep.subr.mxu0 0.0
    %81 = vmatpush1.msra.mxu0 %v65
    %82 = vmatprep.subr.mxu0 0.0
    %83 = vmatpush1.msra.mxu0 %v66
    %84 = vmatprep.subr.mxu0 0.0
    %85 = vmatpush1.msra.mxu0 0.0
    %86 = vmatprep.subr.mxu0 0.0
    %87 = vmatpush1.msra.mxu0 0.0
    %88 = vmatprep.subr.mxu0 0.0
    %89 = vmatpush1.msra.mxu0 0.0
    %90 = vmatprep.subr.mxu0 0.0
    %91 = vmatpush1.msra.mxu0 0.0
    %92 = vmatprep.subr.mxu0 0.0
    %93 = vmatpush1.msra.mxu0 0.0
    %94 = vmatprep.subr.mxu0 0.0
    %95 = vmatpush1.msra.mxu0 0.0
    %96 = vmatprep.subr.mxu0 0.0
    %97 = vmatpush1.msra.mxu0 0.0
    %98 = vmatprep.subr.mxu0 0.0
    %99 = vmatpush1.msra.mxu0 0.0
    %100 = vmatprep.subr.mxu0 0.0
    %101 = vmatpush1.msra.mxu0 0.0
    %102 = vmatprep.subr.mxu0 0.0
    %103 = vmatpush1.msra.mxu0 0.0
    %104 = vmatprep.subr.mxu0 0.0
    %105 = vmatpush1.msra.mxu0 0.0
    %106 = vmatprep.subr.mxu0 0.0
    %107 = vmatpush1.msra.mxu0 0.0
    %108 = vmatprep.subr.mxu0 0.0
    %109 = vmatpush1.msra.mxu0 0.0
    %110 = vmatprep.subr.mxu0 0.0
    %111 = vmatpush1.msra.mxu0 0.0
    %112 = vmatprep.subr.mxu0 0.0
    %113 = vmatpush1.msra.mxu0 0.0
    %114 = vmatprep.subr.mxu0 0.0
    %115 = vmatpush1.msra.mxu0 0.0
    %116 = vmatprep.subr.mxu0 0.0
    %117 = vmatpush1.msra.mxu0 0.0
    %118 = vmatprep.subr.mxu0 0.0
    %119 = vmatpush1.msra.mxu0 0.0
    %120 = vmatprep.subr.mxu0 0.0
    %121 = vmatpush1.msra.mxu0 0.0
    %122 = vmatprep.subr.mxu0 0.0
    %123 = vmatpush1.msra.mxu0 0.0
    %124 = vmatprep.subr.mxu0 0.0
    %125 = vmatpush1.msra.mxu0 0.0
    %126 = vmatprep.subr.mxu0 0.0
    %127 = vmatpush1.msra.mxu0 0.0
    %128 = vmatprep.subr.mxu0 0.0
    %129 = vmatpush1.msra.mxu0 0.0
    %130 = vmatprep.subr.mxu0 0.0
    %131 = vmatpush1.msra.mxu0 0.0
    %132 = vmatprep.subr.mxu0 0.0
    %133 = vmatpush1.msra.mxu0 0.0
    %134 = vmatprep.subr.mxu0 0.0
    %135 = vmatpush1.msra.mxu0 0.0
    %136 = vmatprep.subr.mxu0 0.0
    %137 = vmatpush1.msra.mxu0 0.0
    %138 = vmatprep.subr.mxu0 0.0
    %139 = vmatpush1.msra.mxu0 0.0
    %140 = vmatprep.mubr.f32.mxu0 0.0
    %141 = vmatmul.mubr.f32.gmra.mrb[0].mxu0 %v71
    %v142 = vpop.f32.mrb[0].mxu0
    %v143 = vadd.f32 0.0, %v142
    %v144 = vpop.f32.mrb[0].mxu0
    %145 = vmatprep.mubr.f32.mxu0 0.0
    %146 = vmatmul.mubr.f32.gmra.mrb[0].mxu0 %v74
    %v147 = vpop.f32.mrb[0].mxu0
    %v148 = vadd.f32 0.0, %v147
    %v149 = vpop.f32.mrb[0].mxu0
    %150 = vdwg.mxu0
    %v151 = vadd.f32 %v67, %v143
    %v152 = vadd.f32 %v68, %v148
    %vm153 = vcmask 392192
    %154 = vst.msk [vmem:[#allocation8] sm:$0xff] %vm153, %v151
    %155 = vst.msk [vmem:[#allocation8 + $0x8] sm:$0xff] %vm153, %v152
    // Predicated region
    $region30: #{tpu_custom_call.1} parent=1 // pred_check
      %p156 = pneg %p54
    $region31: #{tpu_custom_call.1} parent=1 // pred_check_branch
      %158 = sbr.rel (%p156) target = $region33
    $region32: #{tpu_custom_call.1} parent=1 // pred_region
      %v159 = vld [vmem:[#allocation8] sm:$0xff]
      %v160 = vld [vmem:[#allocation8 + $0x8] sm:$0xff]
      %v161 = vld [vmem:[#allocation7] sm:$0x1]
      %v163 = vlaneseq
      %v164 = vshrl.u32 %v163, 7
      %v165 = vsub.s32 0, %v164
      %v166 = vrot.slane %v161, %v165
      %v168 = vadd.f32 %v159, %v166
      %v169 = vadd.f32 %v160, %v166
      %170 = vst.msk [vmem:[#allocation8] sm:$0xff] %vm153, %v168
      %171 = vst.msk [vmem:[#allocation8 + $0x8] sm:$0xff] %vm153, %v169
    $region33: #{tpu_custom_call.1} parent=1 // pred_fallthru
      _
    // Predicated region
    $region34: #{tpu_custom_call.1} parent=1 // pred_check
      _
    $region35: #{tpu_custom_call.1} parent=1 // pred_check_branch
      %173 = sbr.rel (0) target = $region37
    $region36: #{tpu_custom_call.1} parent=1 // pred_region
      %s175 = ssub.s32 256, 256
      %176 = vsyncadd [#allocation4], %s175
      %s177 = sshll.u32 [#allocation8], 4
      %s178 = int_to_ptr.vmem [resolvable:$true] %s177
      %183 = dma.vmem_to_hbm [thread:$0]  %s178, 256, %s3, [#allocation4], 128, 128, 8
    $region37: #{tpu_custom_call.1} parent=1 // pred_fallthru
      _
    // Predicated region
    $region38: #{tpu_custom_call.1} parent=1 // pred_check
      _
    $region39: #{tpu_custom_call.1} parent=1 // pred_check_branch
      %185 = sbr.rel (0) target = $region41
    $region40: #{tpu_custom_call.1} parent=1 // pred_region
      %186 = dma.done [#allocation4], 256
    $region41: #{tpu_custom_call.1} parent=1 // pred_fallthru
      _
    %187 = vsyncpa [#allocation3], 1
    %188 = vsyncpa [#allocation6], 1
    %189 = vsyncpa [#allocation4], 1

</llo_original>
